<compile_context>
chip_gen: v5e
topology: v5e:2x2
jax: 0.10.0
libtpu: 0.0.40
codegen_flags: <defaults>
</compile_context>

<pallas_src>
import jax
import jax.numpy as jnp
from jax import lax
from jax.experimental import pallas as pl
from jax.experimental.pallas import tpu as pltpu

EMB_DIM = 80
HIDDEN = 128
LANE = 128
SUBLANE = 8


def _round_up(x, m):
    return (x + m - 1) // m * m


def _classifier_kernel(ids_ref, emb_ref, invc_ref, w1_ref, b1_ref, w2_ref, b2_ref,
                       out_ref, acc_ref):
    k = pl.program_id(0)

    @pl.when(k == 0)
    def _init():
        acc_ref[...] = jnp.zeros_like(acc_ref)

    # Segment-sum pooling for this node tile: build the (B_pad, TN) 0/1
    # membership mask in-register from the int32 graph ids (no dense pool
    # matrix ever touches HBM), then feed the MXU.
    ids = ids_ref[...]                                            # (1, TN) int32
    b_pad = acc_ref.shape[0]
    gid = lax.broadcasted_iota(jnp.int32, (b_pad, ids.shape[1]), 0)
    member = (gid == ids).astype(jnp.bfloat16)                    # (B_pad, TN)
    acc_ref[...] += jnp.dot(member, emb_ref[...],
                            preferred_element_type=jnp.float32)   # (B_pad, 128) f32

    @pl.when(k == pl.num_programs(0) - 1)
    def _finalize():
        # mean pool: scale the f32 node-sum by 1/count (kept in f32 on purpose).
        pooled = acc_ref[...] * invc_ref[...]                     # (B_pad, 128) f32
        # linear1 + ReLU (bf16 matmul operands, f32 accumulate / activations)
        h = jnp.dot(pooled.astype(jnp.bfloat16), w1_ref[...],
                    preferred_element_type=jnp.float32) + b1_ref[...]
        h = jnp.maximum(h, 0.0)
        # TODO(synk): F.dropout(training=self.training) — inference mode => identity.
        # linear2 + sigmoid (exp on EUP + reciprocal; no VALU divide)
        o = jnp.dot(h.astype(jnp.bfloat16), w2_ref[...],
                    preferred_element_type=jnp.float32) + b2_ref[...]
        out_ref[...] = pl.reciprocal(1.0 + jnp.exp(-o), approx=False)


def linear_classifier_forward(node_idx, batch, lm_embedding, w1, b1, w2, b2,
                              num_graphs, *, tile_n=512):
    """node_idx: (N,) int32 token ids; batch: (N,) int32 graph assignment."""
    n_nodes = node_idx.shape[0]
    target_dim = w2.shape[1]

    b_pad = _round_up(max(num_graphs, SUBLANE), SUBLANE)   # sublane-dense B
    d_pad = _round_up(EMB_DIM, LANE)                       # 80  -> 128
    t_pad = _round_up(target_dim, LANE)                    # T   -> 128 (lane-dense out)

    # node-axis tiling (reduction axis); tile must be a multiple of 128 lanes
    if n_nodes <= tile_n:
        tn = _round_up(max(n_nodes, 1), LANE)
        n_pad = tn
    else:
        tn = _round_up(tile_n, LANE)
        n_pad = _round_up(n_nodes, tn)
    num_tiles = n_pad // tn

    # ---- plain-JAX glue: gather + pad to lane-dense shapes, bf16 streaming ----
    emb = lm_embedding[node_idx].astype(jnp.bfloat16)                       # (N, 80)
    emb_p = jnp.pad(emb, ((0, n_pad - n_nodes), (0, d_pad - EMB_DIM)))      # (Np, 128)
    ids_p = jnp.pad(batch.astype(jnp.int32)[None, :],
                    ((0, 0), (0, n_pad - n_nodes)), constant_values=-1)     # (1, Np)

    counts = jnp.zeros((b_pad,), jnp.float32).at[batch].add(1.0)
    inv_counts = (1.0 / jnp.maximum(counts, 1.0)).reshape(b_pad, 1)         # f32

    w1_p = jnp.pad(w1, ((0, d_pad - EMB_DIM), (0, 0))).astype(jnp.bfloat16)         # (128,128)
    b1_p = b1.reshape(1, HIDDEN).astype(jnp.float32)                                 # (1,128)
    w2_p = jnp.pad(w2, ((0, 0), (0, t_pad - target_dim))).astype(jnp.bfloat16)       # (128,128)
    b2_p = jnp.pad(b2.reshape(1, target_dim),
                   ((0, 0), (0, t_pad - target_dim))).astype(jnp.float32)            # (1,128)

    const = lambda shape: pl.BlockSpec(shape, lambda k: (0,) * len(shape))

    cost = pl.CostEstimate(
        flops=2 * b_pad * n_pad * d_pad            # pooling segment-sum matmul
              + 2 * b_pad * d_pad * HIDDEN         # linear1
              + 2 * b_pad * HIDDEN * t_pad,        # linear2
        transcendentals=b_pad * t_pad,             # sigmoid exp
        bytes_accessed=(emb_p.size * 2 + ids_p.size * 4
                        + (w1_p.size + w2_p.size) * 2
                        + (b1_p.size + b2_p.size + inv_counts.size + b_pad * t_pad) * 4),
    )

    out_p = pl.pallas_call(
        _classifier_kernel,
        out_shape=jax.ShapeDtypeStruct((b_pad, t_pad), jnp.float32),
        grid_spec=pltpu.PrefetchScalarGridSpec(
            num_scalar_prefetch=0,
            grid=(num_tiles,),
            in_specs=[
                pl.BlockSpec((1, tn), lambda k: (0, k)),        # graph ids, streamed
                pl.BlockSpec((tn, d_pad), lambda k: (k, 0)),    # embeddings, streamed
                const((b_pad, 1)),                              # 1/count  (resident)
                const((d_pad, HIDDEN)),                         # w1       (resident)
                const((1, HIDDEN)),                             # b1       (resident)
                const((HIDDEN, t_pad)),                         # w2       (resident)
                const((1, t_pad)),                              # b2       (resident)
            ],
            out_specs=pl.BlockSpec((b_pad, t_pad), lambda k: (0, 0)),
            scratch_shapes=[pltpu.VMEM((b_pad, d_pad), jnp.float32)],   # pooled acc
        ),
        compiler_params=pltpu.CompilerParams(
            dimension_semantics=("arbitrary",),     # node axis is a reduction
            vmem_limit_bytes=32 * 1024 * 1024,      # safe on v5e/v6e/v7x; tiles are tiny
        ),
        cost_estimate=cost,
    )(ids_p, emb_p, inv_counts, w1_p, b1_p, w2_p, b2_p)

    return out_p[:num_graphs, :target_dim]


def _reference(node_idx, batch, lm_embedding, w1, b1, w2, b2, num_graphs):
    emb = lm_embedding[node_idx]
    one_hot = (batch[None, :] == jnp.arange(num_graphs)[:, None]).astype(jnp.float32)
    pooled = one_hot @ emb / jnp.maximum(one_hot.sum(1, keepdims=True), 1.0)
    h = jnp.maximum(pooled @ w1 + b1, 0.0)
    return jax.nn.sigmoid(h @ w2 + b2)


if __name__ == "__main__":
    key = jax.random.PRNGKey(0)
    k_emb, k_idx, k_w1, k_b1, k_w2, k_b2 = jax.random.split(key, 6)

    vocab = 32
    target_dim = 4
    num_graphs = 2
    n_nodes = 16

    # frozen pretrained embedding table (synthetic, deterministic)
    lm_embedding = jax.random.normal(k_emb, (vocab, EMB_DIM), dtype=jnp.float32)

    # node token ids and graph-assignment vector (graph 0: first 7 nodes, graph 1: rest)
    node_idx = jax.random.randint(k_idx, (n_nodes,), 0, vocab, dtype=jnp.int32)
    batch = jnp.concatenate([jnp.zeros((7,), jnp.int32), jnp.ones((n_nodes - 7,), jnp.int32)])

    # deterministic linear parameters (nn.Linear-style fan-in scaling)
    w1 = jax.random.uniform(k_w1, (EMB_DIM, HIDDEN), jnp.float32, -1, 1) / jnp.sqrt(EMB_DIM)
    b1 = jax.random.uniform(k_b1, (HIDDEN,), jnp.float32, -1, 1) / jnp.sqrt(EMB_DIM)
    w2 = jax.random.uniform(k_w2, (HIDDEN, target_dim), jnp.float32, -1, 1) / jnp.sqrt(HIDDEN)
    b2 = jax.random.uniform(k_b2, (target_dim,), jnp.float32, -1, 1) / jnp.sqrt(HIDDEN)

    out = linear_classifier_forward(node_idx, batch, lm_embedding, w1, b1, w2, b2, num_graphs)
    out = jax.block_until_ready(out)

    ref = _reference(node_idx, batch, lm_embedding, w1, b1, w2, b2, num_graphs)
    assert out.shape == (num_graphs, target_dim)
    # bf16 matmul operands (f32 accumulate) => relaxed tolerance vs f32 reference
    assert jnp.allclose(out, ref, atol=1e-2, rtol=1e-2), "mismatch vs reference"
    print("KERNEL_OK")
</pallas_src>

<mosaic_0001>
module attributes {stable_mosaic.version = 11 : i64} {
  func.func @_classifier_kernel(%arg0: i32, %arg1: memref<1x128xi32, #tpu.memory_space<vmem>>, %arg2: memref<128x128xbf16, #tpu.memory_space<vmem>>, %arg3: memref<8x1xf32, #tpu.memory_space<vmem>>, %arg4: memref<128x128xbf16, #tpu.memory_space<vmem>>, %arg5: memref<1x128xf32, #tpu.memory_space<vmem>>, %arg6: memref<128x128xbf16, #tpu.memory_space<vmem>>, %arg7: memref<1x128xf32, #tpu.memory_space<vmem>>, %arg8: memref<8x128xf32, #tpu.memory_space<vmem>>, %arg9: memref<8x128xf32, #tpu.memory_space<vmem>>) attributes {dimension_semantics = [#tpu.dimension_semantics<arbitrary>], iteration_bounds = array<i64: 1>, scalar_prefetch = 0 : i64, scratch_operands = 1 : i64, tpu.core_type = #tpu.core_type<tc>, window_params = [{transform_indices = @transform_0, window_bounds = array<i64: 1, 128>}, {transform_indices = @transform_1, window_bounds = array<i64: 128, 128>}, {pipeline_mode = #tpu.pipeline_mode<synchronous>, transform_indices = @transform_2, window_bounds = array<i64: 8, 1>}, {pipeline_mode = #tpu.pipeline_mode<synchronous>, transform_indices = @transform_3, window_bounds = array<i64: 128, 128>}, {pipeline_mode = #tpu.pipeline_mode<synchronous>, transform_indices = @transform_4, window_bounds = array<i64: 1, 128>}, {pipeline_mode = #tpu.pipeline_mode<synchronous>, transform_indices = @transform_5, window_bounds = array<i64: 128, 128>}, {pipeline_mode = #tpu.pipeline_mode<synchronous>, transform_indices = @transform_6, window_bounds = array<i64: 1, 128>}, {pipeline_mode = #tpu.pipeline_mode<synchronous>, transform_indices = @transform_7, window_bounds = array<i64: 8, 128>}]} {
    %c0_i32 = arith.constant 0 : i32
    %0 = arith.cmpi eq, %arg0, %c0_i32 : i32
    %1 = arith.extui %0 : i1 to i32
    %c0_i32_0 = arith.constant 0 : i32
    %2 = arith.cmpi ne, %1, %c0_i32_0 : i32
    scf.if %2 {
      %cst_10 = arith.constant 0.000000e+00 : f32
      %18 = vector.broadcast %cst_10 : f32 to vector<8x128xf32>
      %c0_11 = arith.constant 0 : index
      %c0_12 = arith.constant 0 : index
      %19 = vector.load %arg9[%c0_11, %c0_12] : memref<8x128xf32, #tpu.memory_space<vmem>>, vector<8x128xf32>
      tpu.vector_store %arg9[%c0_11, %c0_12], %18 {strides = array<i32>} : memref<8x128xf32, #tpu.memory_space<vmem>>, vector<8x128xf32>,
    } else {
    }
    %c0 = arith.constant 0 : index
    %c0_1 = arith.constant 0 : index
    %3 = vector.load %arg1[%c0, %c0_1] : memref<1x128xi32, #tpu.memory_space<vmem>>, vector<1x128xi32>
    %4 = tpu.iota {dimensions = array<i32: 0>} : vector<8x128xi32>
    %5 = vector.broadcast %3 : vector<1x128xi32> to vector<8x128xi32>
    %6 = arith.cmpi eq, %4, %5 : vector<8x128xi32>
    %7 = arith.extui %6 : vector<8x128xi1> to vector<8x128xi32>
    %8 = arith.sitofp %7 : vector<8x128xi32> to vector<8x128xf32>
    %9 = arith.truncf %8 : vector<8x128xf32> to vector<8x128xbf16>
    %c0_2 = arith.constant 0 : index
    %c0_3 = arith.constant 0 : index
    %10 = vector.load %arg9[%c0_2, %c0_3] : memref<8x128xf32, #tpu.memory_space<vmem>>, vector<8x128xf32>
    %c0_4 = arith.constant 0 : index
    %c0_5 = arith.constant 0 : index
    %11 = vector.load %arg2[%c0_4, %c0_5] : memref<128x128xbf16, #tpu.memory_space<vmem>>, vector<128x128xbf16>
    %cst = arith.constant dense<0.000000e+00> : vector<8x128xf32>
    %12 = tpu.matmul %9, %11, %cst {dimension_numbers = #tpu.dot_dimension_numbers<[1], [0], [0], [1], [0, 0, 1, 1], [], []>} : vector<8x128xbf16>, vector<128x128xbf16>, vector<8x128xf32> -> vector<8x128xf32>
    %13 = arith.addf %10, %12 : vector<8x128xf32>
    %c0_6 = arith.constant 0 : index
    %c0_7 = arith.constant 0 : index
    %14 = vector.load %arg9[%c0_6, %c0_7] : memref<8x128xf32, #tpu.memory_space<vmem>>, vector<8x128xf32>
    tpu.vector_store %arg9[%c0_6, %c0_7], %13 {strides = array<i32>} : memref<8x128xf32, #tpu.memory_space<vmem>>, vector<8x128xf32>,
    %c0_i32_8 = arith.constant 0 : i32
    %15 = arith.cmpi eq, %arg0, %c0_i32_8 : i32
    %16 = arith.extui %15 : i1 to i32
    %c0_i32_9 = arith.constant 0 : i32
    %17 = arith.cmpi ne, %16, %c0_i32_9 : i32
    scf.if %17 {
      %c0_10 = arith.constant 0 : index
      %c0_11 = arith.constant 0 : index
      %18 = vector.load %arg9[%c0_10, %c0_11] : memref<8x128xf32, #tpu.memory_space<vmem>>, vector<8x128xf32>
      %c0_12 = arith.constant 0 : index
      %c0_13 = arith.constant 0 : index
      %19 = vector.load %arg3[%c0_12, %c0_13] : memref<8x1xf32, #tpu.memory_space<vmem>>, vector<8x1xf32>
      %20 = vector.broadcast %19 : vector<8x1xf32> to vector<8x128xf32>
      %21 = arith.mulf %18, %20 : vector<8x128xf32>
      %22 = arith.truncf %21 : vector<8x128xf32> to vector<8x128xbf16>
      %c0_14 = arith.constant 0 : index
      %c0_15 = arith.constant 0 : index
      %23 = vector.load %arg4[%c0_14, %c0_15] : memref<128x128xbf16, #tpu.memory_space<vmem>>, vector<128x128xbf16>
      %cst_16 = arith.constant dense<0.000000e+00> : vector<8x128xf32>
      %24 = tpu.matmul %22, %23, %cst_16 {dimension_numbers = #tpu.dot_dimension_numbers<[1], [0], [0], [1], [0, 0, 1, 1], [], []>} : vector<8x128xbf16>, vector<128x128xbf16>, vector<8x128xf32> -> vector<8x128xf32>
      %c0_17 = arith.constant 0 : index
      %c0_18 = arith.constant 0 : index
      %25 = vector.load %arg5[%c0_17, %c0_18] : memref<1x128xf32, #tpu.memory_space<vmem>>, vector<1x128xf32>
      %26 = vector.broadcast %25 : vector<1x128xf32> to vector<8x128xf32>
      %27 = arith.addf %24, %26 : vector<8x128xf32>
      %cst_19 = arith.constant 0.000000e+00 : f32
      %28 = vector.broadcast %cst_19 : f32 to vector<8x128xf32>
      %29 = arith.maximumf %27, %28 : vector<8x128xf32>
      %30 = arith.truncf %29 : vector<8x128xf32> to vector<8x128xbf16>
      %c0_20 = arith.constant 0 : index
      %c0_21 = arith.constant 0 : index
      %31 = vector.load %arg6[%c0_20, %c0_21] : memref<128x128xbf16, #tpu.memory_space<vmem>>, vector<128x128xbf16>
      %cst_22 = arith.constant dense<0.000000e+00> : vector<8x128xf32>
      %32 = tpu.matmul %30, %31, %cst_22 {dimension_numbers = #tpu.dot_dimension_numbers<[1], [0], [0], [1], [0, 0, 1, 1], [], []>} : vector<8x128xbf16>, vector<128x128xbf16>, vector<8x128xf32> -> vector<8x128xf32>
      %c0_23 = arith.constant 0 : index
      %c0_24 = arith.constant 0 : index
      %33 = vector.load %arg7[%c0_23, %c0_24] : memref<1x128xf32, #tpu.memory_space<vmem>>, vector<1x128xf32>
      %34 = vector.broadcast %33 : vector<1x128xf32> to vector<8x128xf32>
      %35 = arith.addf %32, %34 : vector<8x128xf32>
      %cst_25 = arith.constant 0.000000e+00 : f32
      %36 = vector.broadcast %cst_25 : f32 to vector<8x128xf32>
      %37 = arith.subf %36, %35 : vector<8x128xf32>
      %38 = math.exp %37 : vector<8x128xf32>
      %cst_26 = arith.constant 1.000000e+00 : f32
      %39 = vector.broadcast %cst_26 : f32 to vector<8x128xf32>
      %40 = arith.addf %39, %38 : vector<8x128xf32>
      %41 = tpu.reciprocal %40 : vector<8x128xf32> -> vector<8x128xf32>
      %c0_27 = arith.constant 0 : index
      %c0_28 = arith.constant 0 : index
      %42 = vector.load %arg8[%c0_27, %c0_28] : memref<8x128xf32, #tpu.memory_space<vmem>>, vector<8x128xf32>
      tpu.vector_store %arg8[%c0_27, %c0_28], %41 {strides = array<i32>} : memref<8x128xf32, #tpu.memory_space<vmem>>, vector<8x128xf32>,
    } else {
    }
    return
  }
  func.func @transform_0(%arg0: i32) -> (i32, i32) {
    %c0_i32 = arith.constant 0 : i32
    %c0_i32_0 = arith.constant 0 : i32
    return %c0_i32, %arg0 : i32, i32
  }
  func.func @transform_1(%arg0: i32) -> (i32, i32) {
    %c0_i32 = arith.constant 0 : i32
    %c0_i32_0 = arith.constant 0 : i32
    return %arg0, %c0_i32 : i32, i32
  }
  func.func @transform_2(%arg0: i32) -> (i32, i32) {
    %c0_i32 = arith.constant 0 : i32
    %c0_i32_0 = arith.constant 0 : i32
    %c0_i32_1 = arith.constant 0 : i32
    return %c0_i32, %c0_i32_0 : i32, i32
  }
  func.func @transform_3(%arg0: i32) -> (i32, i32) {
    %c0_i32 = arith.constant 0 : i32
    %c0_i32_0 = arith.constant 0 : i32
    %c0_i32_1 = arith.constant 0 : i32
    return %c0_i32, %c0_i32_0 : i32, i32
  }
  func.func @transform_4(%arg0: i32) -> (i32, i32) {
    %c0_i32 = arith.constant 0 : i32
    %c0_i32_0 = arith.constant 0 : i32
    %c0_i32_1 = arith.constant 0 : i32
    return %c0_i32, %c0_i32_0 : i32, i32
  }
  func.func @transform_5(%arg0: i32) -> (i32, i32) {
    %c0_i32 = arith.constant 0 : i32
    %c0_i32_0 = arith.constant 0 : i32
    %c0_i32_1 = arith.constant 0 : i32
    return %c0_i32, %c0_i32_0 : i32, i32
  }
  func.func @transform_6(%arg0: i32) -> (i32, i32) {
    %c0_i32 = arith.constant 0 : i32
    %c0_i32_0 = arith.constant 0 : i32
    %c0_i32_1 = arith.constant 0 : i32
    return %c0_i32, %c0_i32_0 : i32, i32
  }
  func.func @transform_7(%arg0: i32) -> (i32, i32) {
    %c0_i32 = arith.constant 0 : i32
    %c0_i32_0 = arith.constant 0 : i32
    %c0_i32_1 = arith.constant 0 : i32
    return %c0_i32, %c0_i32_0 : i32, i32
  }
}

</mosaic_0001>

<llo_original>
// kernel: tpu_custom_call.1
$region0: #{tpu_custom_call.1}
  #allocation0 [shape = 'u32[]', space=smem, size = 0x4, offset = 0x4, fixed_abs, tag = 'smem constant byte address 0x4 - core index']
  #allocation1 [shape = 'u32[72,128]{1,0:T(1,128)}', space=vmem, size = 0x9000, scoped, tag = 'internal scratch']
  #allocation2 [shape = 'f32[8,128]{1,0:T(8,128)}', space=vmem, size = 0x1000, scoped, tag = 'scratch operand']
  %s0 = inlined_call_operand.vmem [shape: s32[1,128], index: 0, kind: input, shape index: {}]
  %s1 = inlined_call_operand.hbm [shape: bf16[128,128], index: 1, kind: input, shape index: {}]
  %s2 = inlined_call_operand.vmem [shape: f32[8,1], index: 2, kind: input, shape index: {}]
  %s3 = inlined_call_operand.hbm [shape: bf16[128,128], index: 3, kind: input, shape index: {}]
  %s4 = inlined_call_operand.vmem [shape: f32[1,128], index: 4, kind: input, shape index: {}]
  %s5 = inlined_call_operand.hbm [shape: bf16[128,128], index: 5, kind: input, shape index: {}]
  %s6 = inlined_call_operand.vmem [shape: f32[1,128], index: 6, kind: input, shape index: {}]
  %s7 = inlined_call_operand.hbm [shape: f32[8,128], index: 7, kind: output, shape index: {}]
  %s8 = sld [smem:[#allocation0]]
  $region58: #{tpu_custom_call.1} parent=0
    _
  %s10 = ssub.s32 1, %s8
  %s11 = scalar_select 0, %s10, %s8
  $region1: #{tpu_custom_call.1} parent=0
    #allocation3 [shape = 'u8[32768]{0}', space=vmem, size = 0x8000, scoped, tag = 'input window, operand 1, single buffered']
    #allocation4 [shape = 's32[1]{0}', space=sflag, size = 0x4, scoped, tag = 'scoped memory for tpu_custom_call.1']
    #allocation5 [shape = 's32[1]{0}', space=sflag, size = 0x4, scoped, tag = 'scoped memory for tpu_custom_call.1']
    #allocation6 [shape = 'u8[32768]{0}', space=vmem, size = 0x8000, scoped, tag = 'input window, operand 3, single buffered']
    #allocation7 [shape = 's32[1]{0}', space=sflag, size = 0x4, scoped, tag = 'scoped memory for tpu_custom_call.1']
    #allocation8 [shape = 'u8[32768]{0}', space=vmem, size = 0x8000, scoped, tag = 'input window, operand 5, single buffered']
    #allocation9 [shape = 'u8[4096]{0}', space=vmem, size = 0x1000, scoped, tag = 'output window, operand 0, single buffered']
    %12 = vsyncpa [#allocation4], 0
    %13 = vsyncpa [#allocation7], 0
    %14 = vsyncpa [#allocation5], 0
    // Predicated region
    $region2: #{tpu_custom_call.1} parent=1 // pred_check
      _
    $region3: #{tpu_custom_call.1} parent=1 // pred_check_branch
      %16 = sbr.rel (0) target = $region5
    $region4: #{tpu_custom_call.1} parent=1 // pred_region
      _
    $region5: #{tpu_custom_call.1} parent=1 // pred_fallthru
      _
    // Predicated region
    $region6: #{tpu_custom_call.1} parent=1 // pred_check
      _
    $region7: #{tpu_custom_call.1} parent=1 // pred_check_branch
      %18 = sbr.rel (0) target = $region9
    $region8: #{tpu_custom_call.1} parent=1 // pred_region
      %20 = vsyncadd [#allocation4], 0
      %s21 = sshll.u32 %s1, 4
      %s22 = int_to_ptr.hbm [resolvable:$true] %s21
      %s23 = sshll.u32 [#allocation3], 4
      %s24 = int_to_ptr.vmem [resolvable:$true] %s23
      %29 = dma.hbm_to_vmem [thread:$0]  %s22, 1024, %s24, [#allocation4], 64, 64, 4
    $region9: #{tpu_custom_call.1} parent=1 // pred_fallthru
      _
    // Predicated region
    $region10: #{tpu_custom_call.1} parent=1 // pred_check
      _
    $region11: #{tpu_custom_call.1} parent=1 // pred_check_branch
      %31 = sbr.rel (0) target = $region13
    $region12: #{tpu_custom_call.1} parent=1 // pred_region
      _
    $region13: #{tpu_custom_call.1} parent=1 // pred_fallthru
      _
    // Predicated region
    $region14: #{tpu_custom_call.1} parent=1 // pred_check
      _
    $region15: #{tpu_custom_call.1} parent=1 // pred_check_branch
      %33 = sbr.rel (0) target = $region17
    $region16: #{tpu_custom_call.1} parent=1 // pred_region
      %35 = vsyncadd [#allocation7], 0
      %s36 = sshll.u32 %s3, 4
      %s37 = int_to_ptr.hbm [resolvable:$true] %s36
      %s38 = sshll.u32 [#allocation6], 4
      %s39 = int_to_ptr.vmem [resolvable:$true] %s38
      %44 = dma.hbm_to_vmem [thread:$0]  %s37, 1024, %s39, [#allocation7], 64, 64, 4
    $region17: #{tpu_custom_call.1} parent=1 // pred_fallthru
      _
    // Predicated region
    $region18: #{tpu_custom_call.1} parent=1 // pred_check
      _
    $region19: #{tpu_custom_call.1} parent=1 // pred_check_branch
      %46 = sbr.rel (0) target = $region21
    $region20: #{tpu_custom_call.1} parent=1 // pred_region
      _
    $region21: #{tpu_custom_call.1} parent=1 // pred_fallthru
      _
    // Predicated region
    $region22: #{tpu_custom_call.1} parent=1 // pred_check
      _
    $region23: #{tpu_custom_call.1} parent=1 // pred_check_branch
      %48 = sbr.rel (0) target = $region25
    $region24: #{tpu_custom_call.1} parent=1 // pred_region
      %50 = vsyncadd [#allocation7], 0
      %s51 = sshll.u32 %s5, 4
      %s52 = int_to_ptr.hbm [resolvable:$true] %s51
      %s53 = sshll.u32 [#allocation8], 4
      %s54 = int_to_ptr.vmem [resolvable:$true] %s53
      %59 = dma.hbm_to_vmem [thread:$0]  %s52, 1024, %s54, [#allocation7], 64, 64, 4
    $region25: #{tpu_custom_call.1} parent=1 // pred_fallthru
      _
    // Predicated region
    $region26: #{tpu_custom_call.1} parent=1 // pred_check
      _
    $region27: #{tpu_custom_call.1} parent=1 // pred_check_branch
      %61 = sbr.rel (0) target = $region29
    $region28: #{tpu_custom_call.1} parent=1 // pred_region
      _
    $region29: #{tpu_custom_call.1} parent=1 // pred_fallthru
      _
    // Predicated region
    $region30: #{tpu_custom_call.1} parent=1 // pred_check
      _
    $region31: #{tpu_custom_call.1} parent=1 // pred_check_branch
      %63 = sbr.rel (0) target = $region33
    $region32: #{tpu_custom_call.1} parent=1 // pred_region
      %65 = dma.done [#allocation4], 1024
    $region33: #{tpu_custom_call.1} parent=1 // pred_fallthru
      _
    // Predicated region
    $region34: #{tpu_custom_call.1} parent=1 // pred_check
      _
    $region35: #{tpu_custom_call.1} parent=1 // pred_check_branch
      %67 = sbr.rel (0) target = $region37
    $region36: #{tpu_custom_call.1} parent=1 // pred_region
      %69 = dma.done [#allocation7], 1024
    $region37: #{tpu_custom_call.1} parent=1 // pred_fallthru
      _
    // Predicated region
    $region38: #{tpu_custom_call.1} parent=1 // pred_check
      _
    $region39: #{tpu_custom_call.1} parent=1 // pred_check_branch
      %71 = sbr.rel (0) target = $region41
    $region40: #{tpu_custom_call.1} parent=1 // pred_region
      %73 = dma.done [#allocation7], 1024
    $region41: #{tpu_custom_call.1} parent=1 // pred_fallthru
      _
    %p74 = scmp.eq.s32.totalorder 0, 0
    // Predicated region
    $region42: #{tpu_custom_call.1} parent=1 // pred_check
      %p75 = pneg %p74
    $region43: #{tpu_custom_call.1} parent=1 // pred_check_branch
      %77 = sbr.rel (%p75) target = $region45
    $region44: #{tpu_custom_call.1} parent=1 // pred_region
      %78 = vst [vmem:[#allocation2] sm:$0xff] 0.0
    $region45: #{tpu_custom_call.1} parent=1 // pred_fallthru
      _
    %v79 = vld [vmem:[%s0] sm:$0x1]
    %v80 = vlaneseq
    %v81 = vshrl.u32 %v80, 7
    %v82 = vperm.slane %v79, 0
    %vm83 = vcmp.eq.s32.totalorder %v81, %v82
    %v84 = vsel %vm83, 1, 0
    %v85 = vcvt.s32.f32 %v84
    %v86 = vpack.c.bf16 %v85, %v85
    %v87 = vld [vmem:[#allocation2] sm:$0xff]
    %v88 = vld [vmem:[#allocation3] sm:$0xf]
    %v89 = vld [vmem:[#allocation3 + $0x4] sm:$0xf]
    %v90 = vld [vmem:[#allocation3 + $0x8] sm:$0xf]
    %v91 = vld [vmem:[#allocation3 + $0xc] sm:$0xf]
    %v92 = vld [vmem:[#allocation3 + $0x10] sm:$0xf]
    %v93 = vld [vmem:[#allocation3 + $0x14] sm:$0xf]
    %v94 = vld [vmem:[#allocation3 + $0x18] sm:$0xf]
    %v95 = vld [vmem:[#allocation3 + $0x1c] sm:$0xf]
    %v96 = vld [vmem:[#allocation3 + $0x20] sm:$0xf]
    %v97 = vld [vmem:[#allocation3 + $0x24] sm:$0xf]
    %v98 = vld [vmem:[#allocation3 + $0x28] sm:$0xf]
    %v99 = vld [vmem:[#allocation3 + $0x2c] sm:$0xf]
    %v100 = vld [vmem:[#allocation3 + $0x30] sm:$0xf]
    %v101 = vld [vmem:[#allocation3 + $0x34] sm:$0xf]
    %v102 = vld [vmem:[#allocation3 + $0x38] sm:$0xf]
    %v103 = vld [vmem:[#allocation3 + $0x3c] sm:$0xf]
    %v120 = vunpack.c.l.b16 %v88
    %v121 = vunpack.c.l.b16 %v89
    %v122 = vunpack.c.l.b16 %v90
    %v123 = vunpack.c.l.b16 %v91
    %v124 = vunpack.c.l.b16 %v92
    %v125 = vunpack.c.l.b16 %v93
    %v126 = vunpack.c.l.b16 %v94
    %v127 = vunpack.c.l.b16 %v95
    %v128 = vunpack.c.l.b16 %v96
    %v129 = vunpack.c.l.b16 %v97
    %v130 = vunpack.c.l.b16 %v98
    %v131 = vunpack.c.l.b16 %v99
    %v132 = vunpack.c.l.b16 %v100
    %v133 = vunpack.c.l.b16 %v101
    %v134 = vunpack.c.l.b16 %v102
    %v135 = vunpack.c.l.b16 %v103
    %v136 = vpack.c.b16 %v121, %v120
    %v137 = vpack.c.b16 %v123, %v122
    %v138 = vpack.c.b16 %v125, %v124
    %v139 = vpack.c.b16 %v127, %v126
    %v140 = vpack.c.b16 %v129, %v128
    %v141 = vpack.c.b16 %v131, %v130
    %v142 = vpack.c.b16 %v133, %v132
    %v143 = vpack.c.b16 %v135, %v134
    %152 = vmatpush.bf16.msra.mxu0 %v143
    %153 = vmatpush.bf16.msra.mxu0 %v142
    %154 = vmatpush.bf16.msra.mxu0 %v141
    %155 = vmatpush.bf16.msra.mxu0 %v140
    %156 = vmatpush.bf16.msra.mxu0 %v139
    %157 = vmatpush.bf16.msra.mxu0 %v138
    %158 = vmatpush.bf16.msra.mxu0 %v137
    %159 = vmatpush.bf16.msra.mxu0 %v136
    %160 = vmatmul.bf16.gmra.mxu0 %v86
    %v161 = vpop.f32.mrf.mxu0
    %v162 = vadd.f32 0.0, %v161
    %v163 = vpop.f32.mrf.mxu0
    %164 = vdwg.mxu0
    %v165 = vadd.f32 %v87, %v162
    %166 = vst [vmem:[#allocation2] sm:$0xff] %v165
    // Predicated region
    $region46: #{tpu_custom_call.1} parent=1 // pred_check
      %p167 = pneg %p74
    $region47: #{tpu_custom_call.1} parent=1 // pred_check_branch
      %169 = sbr.rel (%p167) target = $region49
    $region48: #{tpu_custom_call.1} parent=1 // pred_region
      %v170 = vld [vmem:[#allocation2] sm:$0xff]
      %v171 = vld [vmem:[%s2] sm:$0xff]
      %173 = vset.pattern.permute.xlu0 0
      %174 = vperm.xlu0 %173, %v171
      %v175 = vpop.permute.xlu0 %174
      %v177 = vmul.f32 %v170, %v175
      %v178 = vpack.c.bf16 %v177, %v177
      %v179 = vld [vmem:[#allocation6] sm:$0xf]
      %v180 = vld [vmem:[#allocation6 + $0x4] sm:$0xf]
      %v181 = vld [vmem:[#allocation6 + $0x8] sm:$0xf]
      %v182 = vld [vmem:[#allocation6 + $0xc] sm:$0xf]
      %v183 = vld [vmem:[#allocation6 + $0x10] sm:$0xf]
      %v184 = vld [vmem:[#allocation6 + $0x14] sm:$0xf]
      %v185 = vld [vmem:[#allocation6 + $0x18] sm:$0xf]
      %v186 = vld [vmem:[#allocation6 + $0x1c] sm:$0xf]
      %v187 = vld [vmem:[#allocation6 + $0x20] sm:$0xf]
      %v188 = vld [vmem:[#allocation6 + $0x24] sm:$0xf]
      %v189 = vld [vmem:[#allocation6 + $0x28] sm:$0xf]
      %v190 = vld [vmem:[#allocation6 + $0x2c] sm:$0xf]
      %v191 = vld [vmem:[#allocation6 + $0x30] sm:$0xf]
      %v192 = vld [vmem:[#allocation6 + $0x34] sm:$0xf]
      %v193 = vld [vmem:[#allocation6 + $0x38] sm:$0xf]
      %v194 = vld [vmem:[#allocation6 + $0x3c] sm:$0xf]
      %v195 = vld [vmem:[%s4] sm:$0x1]
      %v197 = vperm.slane %v195, 0
      %v215 = vunpack.c.l.b16 %v179
      %v216 = vunpack.c.l.b16 %v180
      %v217 = vunpack.c.l.b16 %v181
      %v218 = vunpack.c.l.b16 %v182
      %v219 = vunpack.c.l.b16 %v183
      %v220 = vunpack.c.l.b16 %v184
      %v221 = vunpack.c.l.b16 %v185
      %v222 = vunpack.c.l.b16 %v186
      %v223 = vunpack.c.l.b16 %v187
      %v224 = vunpack.c.l.b16 %v188
      %v225 = vunpack.c.l.b16 %v189
      %v226 = vunpack.c.l.b16 %v190
      %v227 = vunpack.c.l.b16 %v191
      %v228 = vunpack.c.l.b16 %v192
      %v229 = vunpack.c.l.b16 %v193
      %v230 = vunpack.c.l.b16 %v194
      %v231 = vpack.c.b16 %v216, %v215
      %v232 = vpack.c.b16 %v218, %v217
      %v233 = vpack.c.b16 %v220, %v219
      %v234 = vpack.c.b16 %v222, %v221
      %v235 = vpack.c.b16 %v224, %v223
      %v236 = vpack.c.b16 %v226, %v225
      %v237 = vpack.c.b16 %v228, %v227
      %v238 = vpack.c.b16 %v230, %v229
      %247 = vmatpush.bf16.msra.mxu0 %v238
      %248 = vmatpush.bf16.msra.mxu0 %v237
      %249 = vmatpush.bf16.msra.mxu0 %v236
      %250 = vmatpush.bf16.msra.mxu0 %v235
      %251 = vmatpush.bf16.msra.mxu0 %v234
      %252 = vmatpush.bf16.msra.mxu0 %v233
      %253 = vmatpush.bf16.msra.mxu0 %v232
      %254 = vmatpush.bf16.msra.mxu0 %v231
      %255 = vmatmul.bf16.gmra.mxu0 %v178
      %v256 = vpop.f32.mrf.mxu0
      %v257 = vadd.f32 %v197, %v256
      %v258 = vpop.f32.mrf.mxu0
      %259 = vdwg.mxu0
      %v260 = vmax.f32 %v257, 0.0
      %v261 = vpack.c.bf16 %v260, %v260
      %v262 = vld [vmem:[#allocation8] sm:$0xf]
      %v263 = vld [vmem:[#allocation8 + $0x4] sm:$0xf]
      %v264 = vld [vmem:[#allocation8 + $0x8] sm:$0xf]
      %v265 = vld [vmem:[#allocation8 + $0xc] sm:$0xf]
      %v266 = vld [vmem:[#allocation8 + $0x10] sm:$0xf]
      %v267 = vld [vmem:[#allocation8 + $0x14] sm:$0xf]
      %v268 = vld [vmem:[#allocation8 + $0x18] sm:$0xf]
      %v269 = vld [vmem:[#allocation8 + $0x1c] sm:$0xf]
      %v270 = vld [vmem:[#allocation8 + $0x20] sm:$0xf]
      %v271 = vld [vmem:[#allocation8 + $0x24] sm:$0xf]
      %v272 = vld [vmem:[#allocation8 + $0x28] sm:$0xf]
      %v273 = vld [vmem:[#allocation8 + $0x2c] sm:$0xf]
      %v274 = vld [vmem:[#allocation8 + $0x30] sm:$0xf]
      %v275 = vld [vmem:[#allocation8 + $0x34] sm:$0xf]
      %v276 = vld [vmem:[#allocation8 + $0x38] sm:$0xf]
      %v277 = vld [vmem:[#allocation8 + $0x3c] sm:$0xf]
      %v278 = vld [vmem:[%s6] sm:$0x1]
      %v280 = vperm.slane %v278, 0
      %v298 = vunpack.c.l.b16 %v262
      %v299 = vunpack.c.l.b16 %v263
      %v300 = vunpack.c.l.b16 %v264
      %v301 = vunpack.c.l.b16 %v265
      %v302 = vunpack.c.l.b16 %v266
      %v303 = vunpack.c.l.b16 %v267
      %v304 = vunpack.c.l.b16 %v268
      %v305 = vunpack.c.l.b16 %v269
      %v306 = vunpack.c.l.b16 %v270
      %v307 = vunpack.c.l.b16 %v271
      %v308 = vunpack.c.l.b16 %v272
      %v309 = vunpack.c.l.b16 %v273
      %v310 = vunpack.c.l.b16 %v274
      %v311 = vunpack.c.l.b16 %v275
      %v312 = vunpack.c.l.b16 %v276
      %v313 = vunpack.c.l.b16 %v277
      %v314 = vpack.c.b16 %v299, %v298
      %v315 = vpack.c.b16 %v301, %v300
      %v316 = vpack.c.b16 %v303, %v302
      %v317 = vpack.c.b16 %v305, %v304
      %v318 = vpack.c.b16 %v307, %v306
      %v319 = vpack.c.b16 %v309, %v308
      %v320 = vpack.c.b16 %v311, %v310
      %v321 = vpack.c.b16 %v313, %v312
      %330 = vmatpush.bf16.msra.mxu0 %v321
      %331 = vmatpush.bf16.msra.mxu0 %v320
      %332 = vmatpush.bf16.msra.mxu0 %v319
      %333 = vmatpush.bf16.msra.mxu0 %v318
      %334 = vmatpush.bf16.msra.mxu0 %v317
      %335 = vmatpush.bf16.msra.mxu0 %v316
      %336 = vmatpush.bf16.msra.mxu0 %v315
      %337 = vmatpush.bf16.msra.mxu0 %v314
      %338 = vmatmul.bf16.gmra.mxu0 %v261
      %v339 = vpop.f32.mrf.mxu0
      %v340 = vadd.f32 %v280, %v339
      %v341 = vpop.f32.mrf.mxu0
      %342 = vdwg.mxu0
      %v343 = vsub.f32 0.0, %v340
      %v344 = vmul.f32 %v343, 1.442695
      %v345 = vpow.pop %v344
      %v346 = vadd.f32 %v345, 1.0
      %v347 = vrcp.pop %v346
      %v348 = vmul.f32 %v346, %v347
      %v349 = vsub.f32 1.0, %v348
      %v350 = vmul.f32 %v347, %v349
      %v351 = vadd.f32 %v347, %v350
      %vm352 = vweird.f32 %v346
      %vm353 = vweird.f32 %v347
      %vm354 = vmor %vm352, %vm353
      %v355 = vsel %vm354, %v347, %v351
      %v356 = vand.u32 2147483647, %v346
      %vm357 = vcmp.eq.f32.partialorder %v356, 8.507059e+37
      %v358 = vand.u32 %v346, 2147483648
      %v359 = vor.u32 1.1754944e-38, %v358
      %v360 = vsel %vm357, %v359, %v355
      %361 = vst [vmem:[#allocation9] sm:$0xff] %v360
    $region49: #{tpu_custom_call.1} parent=1 // pred_fallthru
      _
    // Predicated region
    $region50: #{tpu_custom_call.1} parent=1 // pred_check
      _
    $region51: #{tpu_custom_call.1} parent=1 // pred_check_branch
      %363 = sbr.rel (0) target = $region53
    $region52: #{tpu_custom_call.1} parent=1 // pred_region
      %365 = vsyncadd [#allocation5], 0
      %s367 = sshll.u32 [#allocation9], 4
      %s368 = int_to_ptr.vmem [resolvable:$true] %s367
      %s369 = sshll.u32 %s7, 4
      %s370 = int_to_ptr.hbm [resolvable:$true] %s369
      %372 = dma.vmem_to_hbm [thread:$0]  %s368, 128, %s370, [#allocation5]
    $region53: #{tpu_custom_call.1} parent=1 // pred_fallthru
      _
    // Predicated region
    $region54: #{tpu_custom_call.1} parent=1 // pred_check
      _
    $region55: #{tpu_custom_call.1} parent=1 // pred_check_branch
      %374 = sbr.rel (0) target = $region57
    $region56: #{tpu_custom_call.1} parent=1 // pred_region
      %376 = dma.done [#allocation5], 128
    $region57: #{tpu_custom_call.1} parent=1 // pred_fallthru
      _
    %377 = vsyncpa [#allocation4], 1
    %378 = vsyncpa [#allocation7], 1
    %379 = vsyncpa [#allocation5], 1

</llo_original>
